<compile_context>
chip_gen: v6e
topology: v6e:2x2x1
jax: 0.10.0
libtpu: 0.0.40
codegen_flags: <defaults>
</compile_context>

<pallas_src>
import functools

import numpy as np
import jax
import jax.numpy as jnp
from jax.experimental import pallas as pl
from jax.experimental.pallas import tpu as pltpu

_TILE_E = 128  # edges per grid step (sublane-batched)


# ---------------------------------------------------------------------------
# Host-side persistent-homology pairing (0-dim pairs == MST edges, Kruskal order).
# TODO(synk): union-find pairing is sequential/data-dependent -> stays on host,
#             exactly as the reference does via distances.detach().cpu().numpy().
# ---------------------------------------------------------------------------
class _UnionFind:
    def __init__(self, n):
        self._parent = np.arange(n, dtype=np.int64)

    def find(self, u):
        while self._parent[u] != u:
            self._parent[u] = self._parent[self._parent[u]]
            u = self._parent[u]
        return int(u)

    def merge(self, u, v):
        ru, rv = self.find(u), self.find(v)
        self._parent[ru] = rv


def persistent_homology_pairs(matrix: np.ndarray) -> np.ndarray:
    """0-dim persistence pairs (MST edges), appended in ascending-weight order."""
    uf = _UnionFind(matrix.shape[0])
    triu = np.triu_indices_from(matrix)
    weights = matrix[triu]
    order = np.argsort(weights, kind="stable")
    pairs = []
    for e in order:
        u = int(triu[0][e])
        v = int(triu[1][e])
        younger = uf.find(u)
        older = uf.find(v)
        if younger == older:
            continue
        elif younger > older:
            uf.merge(v, u)
        else:
            uf.merge(u, v)
        pairs.append((u, v) if u < v else (v, u))
    return np.asarray(pairs, dtype=np.int32)


# ---------------------------------------------------------------------------
# Pallas fast path: both matrices resident in VMEM, grid over edge tiles.
#   idx_ref : (TILE_E, 4) int32 VMEM tile, columns = [u1, v1, u2, v2]
#   d1_ref  : (n, n) f32, resident across the whole grid (constant index_map)
#   d2_ref  : (n, n) f32, resident
#   out_ref : (1, 1) f32 final result
#   acc_ref : (TILE_E, 1) f32 VMEM scratch (per-edge-slot partial sums)
# ---------------------------------------------------------------------------
def _topo_sig_kernel(idx_ref, d1_ref, d2_ref, out_ref, acc_ref, *, n_edges):
    t = pl.program_id(0)

    @pl.when(t == 0)
    def _init():
        acc_ref[...] = jnp.zeros_like(acc_ref)

    n = d1_ref.shape[-1]
    idx = idx_ref[...]                      # (TILE_E, 4) int32
    u1 = idx[:, 0:1]                        # (TILE_E, 1)
    v1 = idx[:, 1:2]
    u2 = idx[:, 2:3]
    v2 = idx[:, 3:4]

    lane = jax.lax.broadcasted_iota(jnp.int32, (_TILE_E, n), 1)

    # Batched one-hot row gather on the MXU: rows_k[e, :] == d_k[u_k[e], :].
    rows1 = jnp.dot((lane == u1).astype(jnp.float32), d1_ref[...],
                    preferred_element_type=jnp.float32)
    rows2 = jnp.dot((lane == u2).astype(jnp.float32), d2_ref[...],
                    preferred_element_type=jnp.float32)

    # Fused lane one-hot select + SINGLE cross-lane (XLU) reduce:
    #   vals[e] = d1[u1[e], v1[e]] - d2[u2[e], v2[e]]
    diff_rows = jnp.where(lane == v1, rows1, 0.0) - jnp.where(lane == v2, rows2, 0.0)
    vals = jnp.sum(diff_rows, axis=-1, keepdims=True)          # (TILE_E, 1)

    # Mask padded edges and accumulate squared partials into the lane-resident scratch.
    edge_id = t * _TILE_E + jax.lax.broadcasted_iota(jnp.int32, (_TILE_E, 1), 0)
    acc_ref[...] += jnp.where(edge_id < n_edges, vals * vals, 0.0)

    # Deferred final reduction + single output store (last grid step only).
    @pl.when(t == pl.num_programs(0) - 1)
    def _finalize():
        out_ref[...] = jnp.sum(acc_ref[...], axis=0, keepdims=True)


@functools.partial(jax.jit, static_argnums=(3, 4))
def _signature_sq_error_resident(idx, d1, d2, n_edges, vmem_limit_bytes):
    """sum_e (d1[u1_e, v1_e] - d2[u2_e, v2_e])**2 with VMEM-resident matrices."""
    n = d1.shape[-1]
    e_pad = idx.shape[0]
    num_tiles = e_pad // _TILE_E

    kernel = functools.partial(_topo_sig_kernel, n_edges=n_edges)
    grid_spec = pltpu.PrefetchScalarGridSpec(
        num_scalar_prefetch=0,
        grid=(num_tiles,),
        in_specs=[
            pl.BlockSpec((_TILE_E, 4), lambda t: (t, 0)),   # per-tile edge indices
            pl.BlockSpec((n, n), lambda t: (0, 0)),         # d1 resident (loaded once)
            pl.BlockSpec((n, n), lambda t: (0, 0)),         # d2 resident (loaded once)
        ],
        out_specs=pl.BlockSpec((1, 1), lambda t: (0, 0)),
        scratch_shapes=[pltpu.VMEM((_TILE_E, 1), jnp.float32)],
    )
    dist = pl.pallas_call(
        kernel,
        out_shape=jax.ShapeDtypeStruct((1, 1), jnp.float32),
        grid_spec=grid_spec,
        compiler_params=pltpu.CompilerParams(
            dimension_semantics=("arbitrary",),   # edge-tile axis carries the accumulator
            vmem_limit_bytes=vmem_limit_bytes),
    )(idx, d1.astype(jnp.float32), d2.astype(jnp.float32))
    return dist[0, 0]


@jax.jit
def _signature_sq_error_xla(pairs1, pairs2, d1, d2):
    """Large-n fallback: plain XLA gather (correct; not Pallas)."""
    s1 = d1[pairs1[:, 0], pairs1[:, 1]].astype(jnp.float32)
    s2 = d2[pairs2[:, 0], pairs2[:, 1]].astype(jnp.float32)
    diff = s1 - s2
    return jnp.sum(diff * diff)


def _vmem_capacity_bytes() -> int:
    try:
        cap = int(pltpu.get_tpu_info().vmem_capacity_bytes)
        if cap > 0:
            return cap
    except Exception:
        pass
    return 64 << 20  # conservative default == v7x per-TensorCore VMEM


# ---------------------------------------------------------------------------
# Wrapper (forward pass of TopologicalSignatureDistance with default __init__)
# ---------------------------------------------------------------------------
def topological_signature_distance(distances1, distances2):
    d1 = jnp.asarray(distances1)
    d2 = jnp.asarray(distances2)

    # Host copies only for the (detached) pairing, exactly like the reference.
    d1_np = np.asarray(jax.device_get(d1), dtype=np.float32)
    d2_np = np.asarray(jax.device_get(d2), dtype=np.float32)
    pairs1 = persistent_homology_pairs(d1_np)   # (E, 2), E == n-1
    pairs2 = persistent_homology_pairs(d2_np)

    # matched-0D-pairs metric: integer metadata, no gradient -> host set intersection
    matched = float(len(set(map(tuple, pairs1.tolist()))
                        & set(map(tuple, pairs2.tolist()))))
    components = {"metrics.matched_pairs_0D": matched}

    n_edges = int(pairs1.shape[0]) if pairs1.ndim == 2 else 0
    n_edges2 = int(pairs2.shape[0]) if pairs2.ndim == 2 else 0
    if n_edges == 0 or n_edges2 == 0:
        return jnp.asarray(0.0, dtype=jnp.float32), components
    assert n_edges == n_edges2, (n_edges, n_edges2)

    n = int(d1.shape[-1])
    vmem_cap = _vmem_capacity_bytes()
    # 2 matrices x (conservatively) 2 pipeline buffers x n^2 x 4B + headroom for
    # index tiles / scratch / matmul intermediates. Generation-aware: v7x (64 MiB)
    # gets a lower residency cutoff than v5e/v6e (128 MiB) automatically.
    resident_bytes = 16 * n * n + (8 << 20)
    use_resident = resident_bytes <= int(0.75 * vmem_cap)

    if use_resident:
        e_pad = ((n_edges + _TILE_E - 1) // _TILE_E) * _TILE_E
        idx_np = np.zeros((e_pad, 4), dtype=np.int32)   # pad edges point at (0,0), masked in-kernel
        idx_np[:n_edges, 0:2] = pairs1
        idx_np[:n_edges, 2:4] = pairs2
        # Explicit scoped-VMEM limit (v5e default is only 16 MiB), capped below physical.
        vmem_limit = int(min(max(resident_bytes, 32 << 20), int(0.9 * vmem_cap)))
        distance = _signature_sq_error_resident(
            jnp.asarray(idx_np), d1, d2, n_edges, vmem_limit)
    else:
        # TODO(synk): for matrices too large for VMEM residency, implement the batched
        #             double-buffered manual-DMA row-gather Pallas kernel (pl.ANY inputs
        #             + pltpu.make_async_copy of TILE_E rows per step); plain XLA gather
        #             keeps the forward correct meanwhile.
        distance = _signature_sq_error_xla(jnp.asarray(pairs1), jnp.asarray(pairs2), d1, d2)

    return distance, components


if __name__ == "__main__":
    key = jax.random.PRNGKey(0)
    k1, k2 = jax.random.split(key)
    n_points, feat = 16, 8
    x1 = jax.random.normal(k1, (n_points, feat), dtype=jnp.float32)
    x2 = jax.random.normal(k2, (n_points, feat), dtype=jnp.float32)

    def pdist(x):
        sq = jnp.sum((x[:, None, :] - x[None, :, :]) ** 2, axis=-1)
        return jnp.sqrt(jnp.maximum(sq, 0.0))

    distances1 = pdist(x1)   # (16, 16) pairwise distance matrix in space 1
    distances2 = pdist(x2)   # (16, 16) pairwise distance matrix in space 2

    distance, comps = topological_signature_distance(distances1, distances2)
    distance = jax.block_until_ready(distance)

    # Pure-numpy reference check (mirrors the PyTorch forward semantics)
    d1_np = np.asarray(distances1)
    d2_np = np.asarray(distances2)
    p1 = persistent_homology_pairs(d1_np)
    p2 = persistent_homology_pairs(d2_np)
    sig1 = d1_np[p1[:, 0], p1[:, 1]]
    sig2 = d2_np[p2[:, 0], p2[:, 1]]
    ref_distance = float(np.sum((sig1 - sig2) ** 2))
    ref_match = float(len(set(map(tuple, p1.tolist())) & set(map(tuple, p2.tolist()))))

    assert np.allclose(float(distance), ref_distance, rtol=1e-3, atol=1e-4), \
        (float(distance), ref_distance)
    assert comps["metrics.matched_pairs_0D"] == ref_match, \
        (comps["metrics.matched_pairs_0D"], ref_match)

    print("KERNEL_OK")
</pallas_src>

<mosaic_0001>
module attributes {stable_mosaic.version = 11 : i64} {
  func.func @_topo_sig_kernel(%arg0: i32, %arg1: memref<128x4xi32, #tpu.memory_space<vmem>>, %arg2: memref<16x16xf32, #tpu.memory_space<vmem>>, %arg3: memref<16x16xf32, #tpu.memory_space<vmem>>, %arg4: memref<1x1xf32, #tpu.memory_space<vmem>>, %arg5: memref<128x1xf32, #tpu.memory_space<vmem>>) attributes {dimension_semantics = [#tpu.dimension_semantics<arbitrary>], iteration_bounds = array<i64: 1>, scalar_prefetch = 0 : i64, scratch_operands = 1 : i64, tpu.core_type = #tpu.core_type<tc>, window_params = [{transform_indices = @transform_0, window_bounds = array<i64: 128, 4>}, {pipeline_mode = #tpu.pipeline_mode<synchronous>, transform_indices = @transform_1, window_bounds = array<i64: 16, 16>}, {pipeline_mode = #tpu.pipeline_mode<synchronous>, transform_indices = @transform_2, window_bounds = array<i64: 16, 16>}, {pipeline_mode = #tpu.pipeline_mode<synchronous>, transform_indices = @transform_3, window_bounds = array<i64: 1, 1>}]} {
    %c0_i32 = arith.constant 0 : i32
    %0 = arith.cmpi eq, %arg0, %c0_i32 : i32
    %1 = arith.extui %0 : i1 to i32
    %c0_i32_0 = arith.constant 0 : i32
    %2 = arith.cmpi ne, %1, %c0_i32_0 : i32
    scf.if %2 {
      %cst_17 = arith.constant 0.000000e+00 : f32
      %47 = vector.broadcast %cst_17 : f32 to vector<128x1xf32>
      %c0_18 = arith.constant 0 : index
      %c0_19 = arith.constant 0 : index
      %48 = vector.load %arg5[%c0_18, %c0_19] : memref<128x1xf32, #tpu.memory_space<vmem>>, vector<128x1xf32>
      tpu.vector_store %arg5[%c0_18, %c0_19], %47 {strides = array<i32>} : memref<128x1xf32, #tpu.memory_space<vmem>>, vector<128x1xf32>,
    } else {
    }
    %c0 = arith.constant 0 : index
    %c0_1 = arith.constant 0 : index
    %3 = vector.load %arg1[%c0, %c0_1] : memref<128x4xi32, #tpu.memory_space<vmem>>, vector<128x4xi32>
    %4 = vector.extract_strided_slice %3 {offsets = [0, 0], sizes = [128, 1], strides = [1, 1]} : vector<128x4xi32> to vector<128x1xi32>
    %5 = vector.extract_strided_slice %3 {offsets = [0, 1], sizes = [128, 1], strides = [1, 1]} : vector<128x4xi32> to vector<128x1xi32>
    %6 = vector.extract_strided_slice %3 {offsets = [0, 2], sizes = [128, 1], strides = [1, 1]} : vector<128x4xi32> to vector<128x1xi32>
    %7 = vector.extract_strided_slice %3 {offsets = [0, 3], sizes = [128, 1], strides = [1, 1]} : vector<128x4xi32> to vector<128x1xi32>
    %8 = tpu.iota {dimensions = array<i32: 1>} : vector<128x16xi32>
    %9 = vector.broadcast %4 : vector<128x1xi32> to vector<128x16xi32>
    %10 = arith.cmpi eq, %8, %9 : vector<128x16xi32>
    %11 = arith.extui %10 : vector<128x16xi1> to vector<128x16xi32>
    %12 = arith.sitofp %11 : vector<128x16xi32> to vector<128x16xf32>
    %c0_2 = arith.constant 0 : index
    %c0_3 = arith.constant 0 : index
    %13 = vector.load %arg2[%c0_2, %c0_3] : memref<16x16xf32, #tpu.memory_space<vmem>>, vector<16x16xf32>
    %cst = arith.constant dense<0.000000e+00> : vector<128x16xf32>
    %14 = tpu.matmul %12, %13, %cst {dimension_numbers = #tpu.dot_dimension_numbers<[1], [0], [0], [1], [0, 0, 1, 1], [], []>} : vector<128x16xf32>, vector<16x16xf32>, vector<128x16xf32> -> vector<128x16xf32>
    %15 = vector.broadcast %6 : vector<128x1xi32> to vector<128x16xi32>
    %16 = arith.cmpi eq, %8, %15 : vector<128x16xi32>
    %17 = arith.extui %16 : vector<128x16xi1> to vector<128x16xi32>
    %18 = arith.sitofp %17 : vector<128x16xi32> to vector<128x16xf32>
    %c0_4 = arith.constant 0 : index
    %c0_5 = arith.constant 0 : index
    %19 = vector.load %arg3[%c0_4, %c0_5] : memref<16x16xf32, #tpu.memory_space<vmem>>, vector<16x16xf32>
    %cst_6 = arith.constant dense<0.000000e+00> : vector<128x16xf32>
    %20 = tpu.matmul %18, %19, %cst_6 {dimension_numbers = #tpu.dot_dimension_numbers<[1], [0], [0], [1], [0, 0, 1, 1], [], []>} : vector<128x16xf32>, vector<16x16xf32>, vector<128x16xf32> -> vector<128x16xf32>
    %21 = vector.broadcast %5 : vector<128x1xi32> to vector<128x16xi32>
    %22 = arith.cmpi eq, %8, %21 : vector<128x16xi32>
    %cst_7 = arith.constant 0.000000e+00 : f32
    %23 = vector.broadcast %cst_7 : f32 to vector<128x16xf32>
    %24 = arith.select %22, %14, %23 : vector<128x16xi1>, vector<128x16xf32>
    %25 = vector.broadcast %7 : vector<128x1xi32> to vector<128x16xi32>
    %26 = arith.cmpi eq, %8, %25 : vector<128x16xi32>
    %cst_8 = arith.constant 0.000000e+00 : f32
    %27 = vector.broadcast %cst_8 : f32 to vector<128x16xf32>
    %28 = arith.select %26, %20, %27 : vector<128x16xi1>, vector<128x16xf32>
    %29 = arith.subf %24, %28 : vector<128x16xf32>
    %cst_9 = arith.constant dense<0.000000e+00> : vector<128xf32>
    %30 = vector.multi_reduction <add>, %29, %cst_9 [1] : vector<128x16xf32> to vector<128xf32>
    %31 = vector.shape_cast %30 : vector<128xf32> to vector<128x1xf32>
    %c128_i32 = arith.constant 128 : i32
    %32 = arith.muli %arg0, %c128_i32 : i32
    %33 = tpu.iota {dimensions = array<i32: 0>} : vector<128x1xi32>
    %34 = vector.broadcast %32 : i32 to vector<128x1xi32>
    %35 = arith.addi %34, %33 : vector<128x1xi32>
    %c0_10 = arith.constant 0 : index
    %c0_11 = arith.constant 0 : index
    %36 = vector.load %arg5[%c0_10, %c0_11] : memref<128x1xf32, #tpu.memory_space<vmem>>, vector<128x1xf32>
    %c15_i32 = arith.constant 15 : i32
    %37 = vector.broadcast %c15_i32 : i32 to vector<128x1xi32>
    %38 = arith.cmpi slt, %35, %37 : vector<128x1xi32>
    %39 = arith.mulf %31, %31 : vector<128x1xf32>
    %cst_12 = arith.constant 0.000000e+00 : f32
    %40 = vector.broadcast %cst_12 : f32 to vector<128x1xf32>
    %41 = arith.select %38, %39, %40 : vector<128x1xi1>, vector<128x1xf32>
    %42 = arith.addf %36, %41 : vector<128x1xf32>
    %c0_13 = arith.constant 0 : index
    %c0_14 = arith.constant 0 : index
    %43 = vector.load %arg5[%c0_13, %c0_14] : memref<128x1xf32, #tpu.memory_space<vmem>>, vector<128x1xf32>
    tpu.vector_store %arg5[%c0_13, %c0_14], %42 {strides = array<i32>} : memref<128x1xf32, #tpu.memory_space<vmem>>, vector<128x1xf32>,
    %c0_i32_15 = arith.constant 0 : i32
    %44 = arith.cmpi eq, %arg0, %c0_i32_15 : i32
    %45 = arith.extui %44 : i1 to i32
    %c0_i32_16 = arith.constant 0 : i32
    %46 = arith.cmpi ne, %45, %c0_i32_16 : i32
    scf.if %46 {
      %c0_17 = arith.constant 0 : index
      %c0_18 = arith.constant 0 : index
      %47 = vector.load %arg5[%c0_17, %c0_18] : memref<128x1xf32, #tpu.memory_space<vmem>>, vector<128x1xf32>
      %cst_19 = arith.constant dense<0.000000e+00> : vector<1xf32>
      %48 = vector.multi_reduction <add>, %47, %cst_19 [0] : vector<128x1xf32> to vector<1xf32>
      %49 = vector.shape_cast %48 : vector<1xf32> to vector<1x1xf32>
      %c0_20 = arith.constant 0 : index
      %c0_21 = arith.constant 0 : index
      %50 = vector.load %arg4[%c0_20, %c0_21] : memref<1x1xf32, #tpu.memory_space<vmem>>, vector<1x1xf32>
      tpu.vector_store %arg4[%c0_20, %c0_21], %49 {strides = array<i32>} : memref<1x1xf32, #tpu.memory_space<vmem>>, vector<1x1xf32>,
    } else {
    }
    return
  }
  func.func @transform_0(%arg0: i32) -> (i32, i32) {
    %c0_i32 = arith.constant 0 : i32
    %c0_i32_0 = arith.constant 0 : i32
    return %arg0, %c0_i32 : i32, i32
  }
  func.func @transform_1(%arg0: i32) -> (i32, i32) {
    %c0_i32 = arith.constant 0 : i32
    %c0_i32_0 = arith.constant 0 : i32
    %c0_i32_1 = arith.constant 0 : i32
    return %c0_i32, %c0_i32_0 : i32, i32
  }
  func.func @transform_2(%arg0: i32) -> (i32, i32) {
    %c0_i32 = arith.constant 0 : i32
    %c0_i32_0 = arith.constant 0 : i32
    %c0_i32_1 = arith.constant 0 : i32
    return %c0_i32, %c0_i32_0 : i32, i32
  }
  func.func @transform_3(%arg0: i32) -> (i32, i32) {
    %c0_i32 = arith.constant 0 : i32
    %c0_i32_0 = arith.constant 0 : i32
    %c0_i32_1 = arith.constant 0 : i32
    return %c0_i32, %c0_i32_0 : i32, i32
  }
}

</mosaic_0001>

<llo_original>
// kernel: _signature_sq_error_resident.1
$region0: #{_signature_sq_error_resident.1}
  #allocation0 [shape = 'u32[]', space=smem, size = 0x4, offset = 0x4, fixed_abs, tag = 'smem constant byte address 0x4 - core index']
  #allocation1 [shape = 'u32[144,128]{1,0:T(1,128)}', space=vmem, size = 0x12000, scoped, tag = 'internal scratch']
  #allocation2 [shape = 'f32[128,1]{1,0:T(8,128)}', space=vmem, size = 0x10000, scoped, tag = 'scratch operand']
  %s0 = inlined_call_operand.vmem [shape: s32[128,4], index: 0, kind: input, shape index: {}]
  %s1 = inlined_call_operand.vmem [shape: f32[16,16], index: 1, kind: input, shape index: {}]
  %s2 = inlined_call_operand.vmem [shape: f32[16,16], index: 2, kind: input, shape index: {}]
  %s3 = inlined_call_operand.hbm [shape: f32[1,1], index: 3, kind: output, shape index: {}]
  %s4 = sld [smem:[#allocation0]]
  $region30: #{_signature_sq_error_resident.1} parent=0
    _
  %s6 = ssub.s32 1, %s4
  %s7 = scalar_select 0, %s6, %s4
  $region1: #{_signature_sq_error_resident.1} parent=0
    #allocation3 [shape = 'u8[512]{0}', space=vmem, size = 0x400, scoped, tag = 'output window, operand 0, single buffered']
    #allocation4 [shape = 's32[1]{0}', space=sflag, size = 0x4, scoped, tag = 'scoped memory for _signature_sq_error_resident.1']
    %8 = vsyncpa [#allocation4], 0
    // Predicated region
    $region2: #{_signature_sq_error_resident.1} parent=1 // pred_check
      _
    $region3: #{_signature_sq_error_resident.1} parent=1 // pred_check_branch
      %10 = sbr.rel (0) target = $region5
    $region4: #{_signature_sq_error_resident.1} parent=1 // pred_region
      _
    $region5: #{_signature_sq_error_resident.1} parent=1 // pred_fallthru
      _
    // Predicated region
    $region6: #{_signature_sq_error_resident.1} parent=1 // pred_check
      _
    $region7: #{_signature_sq_error_resident.1} parent=1 // pred_check_branch
      %12 = sbr.rel (0) target = $region9
    $region8: #{_signature_sq_error_resident.1} parent=1 // pred_region
      _
    $region9: #{_signature_sq_error_resident.1} parent=1 // pred_fallthru
      _
    // Predicated region
    $region10: #{_signature_sq_error_resident.1} parent=1 // pred_check
      _
    $region11: #{_signature_sq_error_resident.1} parent=1 // pred_check_branch
      %14 = sbr.rel (0) target = $region13
    $region12: #{_signature_sq_error_resident.1} parent=1 // pred_region
      _
    $region13: #{_signature_sq_error_resident.1} parent=1 // pred_fallthru
      _
    %p15 = scmp.eq.s32.totalorder 0, 0
    // Predicated region
    $region14: #{_signature_sq_error_resident.1} parent=1 // pred_check
      %p16 = pneg %p15
    $region15: #{_signature_sq_error_resident.1} parent=1 // pred_check_branch
      %18 = sbr.rel (%p16) target = $region17
    $region16: #{_signature_sq_error_resident.1} parent=1 // pred_region
      %vm19 = vcmask 7168
      %20 = vst.msk [vmem:[#allocation2] sm:$0xff] %vm19, 0.0
      %21 = vst.msk [vmem:[#allocation2 + $0x8] sm:$0xff] %vm19, 0.0
      %22 = vst.msk [vmem:[#allocation2 + $0x10] sm:$0xff] %vm19, 0.0
      %23 = vst.msk [vmem:[#allocation2 + $0x18] sm:$0xff] %vm19, 0.0
      %24 = vst.msk [vmem:[#allocation2 + $0x20] sm:$0xff] %vm19, 0.0
      %25 = vst.msk [vmem:[#allocation2 + $0x28] sm:$0xff] %vm19, 0.0
      %26 = vst.msk [vmem:[#allocation2 + $0x30] sm:$0xff] %vm19, 0.0
      %27 = vst.msk [vmem:[#allocation2 + $0x38] sm:$0xff] %vm19, 0.0
      %28 = vst.msk [vmem:[#allocation2 + $0x40] sm:$0xff] %vm19, 0.0
      %29 = vst.msk [vmem:[#allocation2 + $0x48] sm:$0xff] %vm19, 0.0
      %30 = vst.msk [vmem:[#allocation2 + $0x50] sm:$0xff] %vm19, 0.0
      %31 = vst.msk [vmem:[#allocation2 + $0x58] sm:$0xff] %vm19, 0.0
      %32 = vst.msk [vmem:[#allocation2 + $0x60] sm:$0xff] %vm19, 0.0
      %33 = vst.msk [vmem:[#allocation2 + $0x68] sm:$0xff] %vm19, 0.0
      %34 = vst.msk [vmem:[#allocation2 + $0x70] sm:$0xff] %vm19, 0.0
      %35 = vst.msk [vmem:[#allocation2 + $0x78] sm:$0xff] %vm19, 0.0
    $region17: #{_signature_sq_error_resident.1} parent=1 // pred_fallthru
      _
    %v36 = vld [vmem:[%s0] sm:$0xff]
    %v37 = vld [vmem:[%s0 + $0x8] sm:$0xff]
    %v38 = vld [vmem:[%s0 + $0x10] sm:$0xff]
    %v39 = vld [vmem:[%s0 + $0x18] sm:$0xff]
    %v40 = vld [vmem:[%s0 + $0x20] sm:$0xff]
    %v41 = vld [vmem:[%s0 + $0x28] sm:$0xff]
    %v42 = vld [vmem:[%s0 + $0x30] sm:$0xff]
    %v43 = vld [vmem:[%s0 + $0x38] sm:$0xff]
    %v44 = vld [vmem:[%s0 + $0x40] sm:$0xff]
    %v45 = vld [vmem:[%s0 + $0x48] sm:$0xff]
    %v46 = vld [vmem:[%s0 + $0x50] sm:$0xff]
    %v47 = vld [vmem:[%s0 + $0x58] sm:$0xff]
    %v48 = vld [vmem:[%s0 + $0x60] sm:$0xff]
    %v49 = vld [vmem:[%s0 + $0x68] sm:$0xff]
    %v50 = vld [vmem:[%s0 + $0x70] sm:$0xff]
    %v51 = vld [vmem:[%s0 + $0x78] sm:$0xff]
    %v52 = vlaneseq
    %v53 = vand.u32 %v52, 127
    %54 = vset.pattern.permute.xlu0 0
    %55 = vperm.xlu0 %54, %v36
    %v56 = vpop.permute.xlu0 %55
    %57 = vset.pattern.permute.xlu0 0
    %58 = vperm.xlu0 %57, %v37
    %v59 = vpop.permute.xlu0 %58
    %60 = vset.pattern.permute.xlu0 0
    %61 = vperm.xlu0 %60, %v38
    %v62 = vpop.permute.xlu0 %61
    %63 = vset.pattern.permute.xlu0 0
    %64 = vperm.xlu0 %63, %v39
    %v65 = vpop.permute.xlu0 %64
    %66 = vset.pattern.permute.xlu0 0
    %67 = vperm.xlu0 %66, %v40
    %v68 = vpop.permute.xlu0 %67
    %69 = vset.pattern.permute.xlu0 0
    %70 = vperm.xlu0 %69, %v41
    %v71 = vpop.permute.xlu0 %70
    %72 = vset.pattern.permute.xlu0 0
    %73 = vperm.xlu0 %72, %v42
    %v74 = vpop.permute.xlu0 %73
    %75 = vset.pattern.permute.xlu0 0
    %76 = vperm.xlu0 %75, %v43
    %v77 = vpop.permute.xlu0 %76
    %78 = vset.pattern.permute.xlu0 0
    %79 = vperm.xlu0 %78, %v44
    %v80 = vpop.permute.xlu0 %79
    %81 = vset.pattern.permute.xlu0 0
    %82 = vperm.xlu0 %81, %v45
    %v83 = vpop.permute.xlu0 %82
    %84 = vset.pattern.permute.xlu0 0
    %85 = vperm.xlu0 %84, %v46
    %v86 = vpop.permute.xlu0 %85
    %87 = vset.pattern.permute.xlu0 0
    %88 = vperm.xlu0 %87, %v47
    %v89 = vpop.permute.xlu0 %88
    %90 = vset.pattern.permute.xlu0 0
    %91 = vperm.xlu0 %90, %v48
    %v92 = vpop.permute.xlu0 %91
    %93 = vset.pattern.permute.xlu0 0
    %94 = vperm.xlu0 %93, %v49
    %v95 = vpop.permute.xlu0 %94
    %96 = vset.pattern.permute.xlu0 0
    %97 = vperm.xlu0 %96, %v50
    %v98 = vpop.permute.xlu0 %97
    %99 = vset.pattern.permute.xlu0 0
    %100 = vperm.xlu0 %99, %v51
    %v101 = vpop.permute.xlu0 %100
    %vm102 = vcmp.eq.s32.totalorder %v53, %v56
    %vm103 = vcmp.eq.s32.totalorder %v53, %v59
    %vm104 = vcmp.eq.s32.totalorder %v53, %v62
    %vm105 = vcmp.eq.s32.totalorder %v53, %v65
    %vm106 = vcmp.eq.s32.totalorder %v53, %v68
    %vm107 = vcmp.eq.s32.totalorder %v53, %v71
    %vm108 = vcmp.eq.s32.totalorder %v53, %v74
    %vm109 = vcmp.eq.s32.totalorder %v53, %v77
    %vm110 = vcmp.eq.s32.totalorder %v53, %v80
    %vm111 = vcmp.eq.s32.totalorder %v53, %v83
    %vm112 = vcmp.eq.s32.totalorder %v53, %v86
    %vm113 = vcmp.eq.s32.totalorder %v53, %v89
    %vm114 = vcmp.eq.s32.totalorder %v53, %v92
    %vm115 = vcmp.eq.s32.totalorder %v53, %v95
    %vm116 = vcmp.eq.s32.totalorder %v53, %v98
    %vm117 = vcmp.eq.s32.totalorder %v53, %v101
    %v118 = vsel %vm102, 1, 0
    %v119 = vsel %vm103, 1, 0
    %v120 = vsel %vm104, 1, 0
    %v121 = vsel %vm105, 1, 0
    %v122 = vsel %vm106, 1, 0
    %v123 = vsel %vm107, 1, 0
    %v124 = vsel %vm108, 1, 0
    %v125 = vsel %vm109, 1, 0
    %v126 = vsel %vm110, 1, 0
    %v127 = vsel %vm111, 1, 0
    %v128 = vsel %vm112, 1, 0
    %v129 = vsel %vm113, 1, 0
    %v130 = vsel %vm114, 1, 0
    %v131 = vsel %vm115, 1, 0
    %v132 = vsel %vm116, 1, 0
    %v133 = vsel %vm117, 1, 0
    %v134 = vcvt.s32.f32 %v118
    %v135 = vcvt.s32.f32 %v119
    %v136 = vcvt.s32.f32 %v120
    %v137 = vcvt.s32.f32 %v121
    %v138 = vcvt.s32.f32 %v122
    %v139 = vcvt.s32.f32 %v123
    %v140 = vcvt.s32.f32 %v124
    %v141 = vcvt.s32.f32 %v125
    %v142 = vcvt.s32.f32 %v126
    %v143 = vcvt.s32.f32 %v127
    %v144 = vcvt.s32.f32 %v128
    %v145 = vcvt.s32.f32 %v129
    %v146 = vcvt.s32.f32 %v130
    %v147 = vcvt.s32.f32 %v131
    %v148 = vcvt.s32.f32 %v132
    %v149 = vcvt.s32.f32 %v133
    %v150 = vld [vmem:[%s1] sm:$0xff]
    %v151 = vld [vmem:[%s1 + $0x8] sm:$0xff]
    %vm152 = vcmask 130048
    %v154 = vsel %vm152, %v134, 0
    %v157 = vsel %vm152, %v135, 0
    %v160 = vsel %vm152, %v136, 0
    %v163 = vsel %vm152, %v137, 0
    %v166 = vsel %vm152, %v138, 0
    %v169 = vsel %vm152, %v139, 0
    %v172 = vsel %vm152, %v140, 0
    %v175 = vsel %vm152, %v141, 0
    %v178 = vsel %vm152, %v142, 0
    %v181 = vsel %vm152, %v143, 0
    %v184 = vsel %vm152, %v144, 0
    %v187 = vsel %vm152, %v145, 0
    %v190 = vsel %vm152, %v146, 0
    %v193 = vsel %vm152, %v147, 0
    %v196 = vsel %vm152, %v148, 0
    %v199 = vsel %vm152, %v149, 0
    %201 = vmatprep.subr.mxu0 0.0
    %202 = vmatpush1.msra.mxu0 0.0
    %203 = vmatprep.subr.mxu0 0.0
    %204 = vmatpush1.msra.mxu0 0.0
    %205 = vmatprep.subr.mxu0 0.0
    %206 = vmatpush1.msra.mxu0 0.0
    %207 = vmatprep.subr.mxu0 0.0
    %208 = vmatpush1.msra.mxu0 0.0
    %209 = vmatprep.subr.mxu0 0.0
    %210 = vmatpush1.msra.mxu0 0.0
    %211 = vmatprep.subr.mxu0 0.0
    %212 = vmatpush1.msra.mxu0 0.0
    %213 = vmatprep.subr.mxu0 0.0
    %214 = vmatpush1.msra.mxu0 0.0
    %215 = vmatprep.subr.mxu0 0.0
    %216 = vmatpush1.msra.mxu0 0.0
    %217 = vmatprep.subr.mxu0 0.0
    %218 = vmatpush1.msra.mxu0 0.0
    %219 = vmatprep.subr.mxu0 0.0
    %220 = vmatpush1.msra.mxu0 0.0
    %221 = vmatprep.subr.mxu0 0.0
    %222 = vmatpush1.msra.mxu0 0.0
    %223 = vmatprep.subr.mxu0 0.0
    %224 = vmatpush1.msra.mxu0 0.0
    %225 = vmatprep.subr.mxu0 0.0
    %226 = vmatpush1.msra.mxu0 0.0
    %227 = vmatprep.subr.mxu0 0.0
    %228 = vmatpush1.msra.mxu0 0.0
    %229 = vmatprep.subr.mxu0 0.0
    %230 = vmatpush1.msra.mxu0 %v151
    %231 = vmatprep.subr.mxu0 0.0
    %232 = vmatpush1.msra.mxu0 %v150
    %233 = vmatprep.subr.mxu0 0.0
    %234 = vmatpush2.msra.mxu0 0.0
    %235 = vmatprep.subr.mxu0 0.0
    %236 = vmatpush2.msra.mxu0 0.0
    %237 = vmatprep.subr.mxu0 0.0
    %238 = vmatpush2.msra.mxu0 0.0
    %239 = vmatprep.subr.mxu0 0.0
    %240 = vmatpush2.msra.mxu0 0.0
    %241 = vmatprep.subr.mxu0 0.0
    %242 = vmatpush2.msra.mxu0 0.0
    %243 = vmatprep.subr.mxu0 0.0
    %244 = vmatpush2.msra.mxu0 0.0
    %245 = vmatprep.subr.mxu0 0.0
    %246 = vmatpush2.msra.mxu0 0.0
    %247 = vmatprep.subr.mxu0 0.0
    %248 = vmatpush2.msra.mxu0 0.0
    %249 = vmatprep.subr.mxu0 0.0
    %250 = vmatpush2.msra.mxu0 0.0
    %251 = vmatprep.subr.mxu0 0.0
    %252 = vmatpush2.msra.mxu0 0.0
    %253 = vmatprep.subr.mxu0 0.0
    %254 = vmatpush2.msra.mxu0 0.0
    %255 = vmatprep.subr.mxu0 0.0
    %256 = vmatpush2.msra.mxu0 0.0
    %257 = vmatprep.subr.mxu0 0.0
    %258 = vmatpush2.msra.mxu0 0.0
    %259 = vmatprep.subr.mxu0 0.0
    %260 = vmatpush2.msra.mxu0 0.0
    %261 = vmatprep.subr.mxu0 0.0
    %262 = vmatpush2.msra.mxu0 0.0
    %263 = vmatprep.subr.mxu0 0.0
    %264 = vmatpush2.msra.mxu0 0.0
    %265 = vmatprep.mubr.f32.mxu0 0.0
    %266 = vmatmul.mubr.f32.gmra.mxu0 %v154
    %v267 = vpop.f32.mrf.mxu0
    %v268 = vadd.f32 0.0, %v267
    %v269 = vpop.f32.mrf.mxu0
    %270 = vmatprep.mubr.f32.mxu0 0.0
    %271 = vmatmul.mubr.f32.gmra.mxu0 %v157
    %v272 = vpop.f32.mrf.mxu0
    %v273 = vadd.f32 0.0, %v272
    %v274 = vpop.f32.mrf.mxu0
    %275 = vmatprep.mubr.f32.mxu0 0.0
    %276 = vmatmul.mubr.f32.gmra.mxu0 %v160
    %v277 = vpop.f32.mrf.mxu0
    %v278 = vadd.f32 0.0, %v277
    %v279 = vpop.f32.mrf.mxu0
    %280 = vmatprep.mubr.f32.mxu0 0.0
    %281 = vmatmul.mubr.f32.gmra.mxu0 %v163
    %v282 = vpop.f32.mrf.mxu0
    %v283 = vadd.f32 0.0, %v282
    %v284 = vpop.f32.mrf.mxu0
    %285 = vmatprep.mubr.f32.mxu0 0.0
    %286 = vmatmul.mubr.f32.gmra.mxu0 %v166
    %v287 = vpop.f32.mrf.mxu0
    %v288 = vadd.f32 0.0, %v287
    %v289 = vpop.f32.mrf.mxu0
    %290 = vmatprep.mubr.f32.mxu0 0.0
    %291 = vmatmul.mubr.f32.gmra.mxu0 %v169
    %v292 = vpop.f32.mrf.mxu0
    %v293 = vadd.f32 0.0, %v292
    %v294 = vpop.f32.mrf.mxu0
    %295 = vmatprep.mubr.f32.mxu0 0.0
    %296 = vmatmul.mubr.f32.gmra.mxu0 %v172
    %v297 = vpop.f32.mrf.mxu0
    %v298 = vadd.f32 0.0, %v297
    %v299 = vpop.f32.mrf.mxu0
    %300 = vmatprep.mubr.f32.mxu0 0.0
    %301 = vmatmul.mubr.f32.gmra.mxu0 %v175
    %v302 = vpop.f32.mrf.mxu0
    %v303 = vadd.f32 0.0, %v302
    %v304 = vpop.f32.mrf.mxu0
    %305 = vmatprep.mubr.f32.mxu0 0.0
    %306 = vmatmul.mubr.f32.gmra.mxu0 %v178
    %v307 = vpop.f32.mrf.mxu0
    %v308 = vadd.f32 0.0, %v307
    %v309 = vpop.f32.mrf.mxu0
    %310 = vmatprep.mubr.f32.mxu0 0.0
    %311 = vmatmul.mubr.f32.gmra.mxu0 %v181
    %v312 = vpop.f32.mrf.mxu0
    %v313 = vadd.f32 0.0, %v312
    %v314 = vpop.f32.mrf.mxu0
    %315 = vmatprep.mubr.f32.mxu0 0.0
    %316 = vmatmul.mubr.f32.gmra.mxu0 %v184
    %v317 = vpop.f32.mrf.mxu0
    %v318 = vadd.f32 0.0, %v317
    %v319 = vpop.f32.mrf.mxu0
    %320 = vmatprep.mubr.f32.mxu0 0.0
    %321 = vmatmul.mubr.f32.gmra.mxu0 %v187
    %v322 = vpop.f32.mrf.mxu0
    %v323 = vadd.f32 0.0, %v322
    %v324 = vpop.f32.mrf.mxu0
    %325 = vmatprep.mubr.f32.mxu0 0.0
    %326 = vmatmul.mubr.f32.gmra.mxu0 %v190
    %v327 = vpop.f32.mrf.mxu0
    %v328 = vadd.f32 0.0, %v327
    %v329 = vpop.f32.mrf.mxu0
    %330 = vmatprep.mubr.f32.mxu0 0.0
    %331 = vmatmul.mubr.f32.gmra.mxu0 %v193
    %v332 = vpop.f32.mrf.mxu0
    %v333 = vadd.f32 0.0, %v332
    %v334 = vpop.f32.mrf.mxu0
    %335 = vmatprep.mubr.f32.mxu0 0.0
    %336 = vmatmul.mubr.f32.gmra.mxu0 %v196
    %v337 = vpop.f32.mrf.mxu0
    %v338 = vadd.f32 0.0, %v337
    %v339 = vpop.f32.mrf.mxu0
    %340 = vmatprep.mubr.f32.mxu0 0.0
    %341 = vmatmul.mubr.f32.gmra.mxu0 %v199
    %v342 = vpop.f32.mrf.mxu0
    %v343 = vadd.f32 0.0, %v342
    %v344 = vpop.f32.mrf.mxu0
    %345 = vdwg.mxu0
    %346 = vset.pattern.permute.xlu0 2
    %347 = vperm.xlu0 %346, %v36
    %v348 = vpop.permute.xlu0 %347
    %349 = vset.pattern.permute.xlu0 2
    %350 = vperm.xlu0 %349, %v37
    %v351 = vpop.permute.xlu0 %350
    %352 = vset.pattern.permute.xlu0 2
    %353 = vperm.xlu0 %352, %v38
    %v354 = vpop.permute.xlu0 %353
    %355 = vset.pattern.permute.xlu0 2
    %356 = vperm.xlu0 %355, %v39
    %v357 = vpop.permute.xlu0 %356
    %358 = vset.pattern.permute.xlu0 2
    %359 = vperm.xlu0 %358, %v40
    %v360 = vpop.permute.xlu0 %359
    %361 = vset.pattern.permute.xlu0 2
    %362 = vperm.xlu0 %361, %v41
    %v363 = vpop.permute.xlu0 %362
    %364 = vset.pattern.permute.xlu0 2
    %365 = vperm.xlu0 %364, %v42
    %v366 = vpop.permute.xlu0 %365
    %367 = vset.pattern.permute.xlu0 2
    %368 = vperm.xlu0 %367, %v43
    %v369 = vpop.permute.xlu0 %368
    %370 = vset.pattern.permute.xlu0 2
    %371 = vperm.xlu0 %370, %v44
    %v372 = vpop.permute.xlu0 %371
    %373 = vset.pattern.permute.xlu0 2
    %374 = vperm.xlu0 %373, %v45
    %v375 = vpop.permute.xlu0 %374
    %376 = vset.pattern.permute.xlu0 2
    %377 = vperm.xlu0 %376, %v46
    %v378 = vpop.permute.xlu0 %377
    %379 = vset.pattern.permute.xlu0 2
    %380 = vperm.xlu0 %379, %v47
    %v381 = vpop.permute.xlu0 %380
    %382 = vset.pattern.permute.xlu0 2
    %383 = vperm.xlu0 %382, %v48
    %v384 = vpop.permute.xlu0 %383
    %385 = vset.pattern.permute.xlu0 2
    %386 = vperm.xlu0 %385, %v49
    %v387 = vpop.permute.xlu0 %386
    %388 = vset.pattern.permute.xlu0 2
    %389 = vperm.xlu0 %388, %v50
    %v390 = vpop.permute.xlu0 %389
    %391 = vset.pattern.permute.xlu0 2
    %392 = vperm.xlu0 %391, %v51
    %v393 = vpop.permute.xlu0 %392
    %vm394 = vcmp.eq.s32.totalorder %v53, %v348
    %vm395 = vcmp.eq.s32.totalorder %v53, %v351
    %vm396 = vcmp.eq.s32.totalorder %v53, %v354
    %vm397 = vcmp.eq.s32.totalorder %v53, %v357
    %vm398 = vcmp.eq.s32.totalorder %v53, %v360
    %vm399 = vcmp.eq.s32.totalorder %v53, %v363
    %vm400 = vcmp.eq.s32.totalorder %v53, %v366
    %vm401 = vcmp.eq.s32.totalorder %v53, %v369
    %vm402 = vcmp.eq.s32.totalorder %v53, %v372
    %vm403 = vcmp.eq.s32.totalorder %v53, %v375
    %vm404 = vcmp.eq.s32.totalorder %v53, %v378
    %vm405 = vcmp.eq.s32.totalorder %v53, %v381
    %vm406 = vcmp.eq.s32.totalorder %v53, %v384
    %vm407 = vcmp.eq.s32.totalorder %v53, %v387
    %vm408 = vcmp.eq.s32.totalorder %v53, %v390
    %vm409 = vcmp.eq.s32.totalorder %v53, %v393
    %v410 = vsel %vm394, 1, 0
    %v411 = vsel %vm395, 1, 0
    %v412 = vsel %vm396, 1, 0
    %v413 = vsel %vm397, 1, 0
    %v414 = vsel %vm398, 1, 0
    %v415 = vsel %vm399, 1, 0
    %v416 = vsel %vm400, 1, 0
    %v417 = vsel %vm401, 1, 0
    %v418 = vsel %vm402, 1, 0
    %v419 = vsel %vm403, 1, 0
    %v420 = vsel %vm404, 1, 0
    %v421 = vsel %vm405, 1, 0
    %v422 = vsel %vm406, 1, 0
    %v423 = vsel %vm407, 1, 0
    %v424 = vsel %vm408, 1, 0
    %v425 = vsel %vm409, 1, 0
    %v426 = vcvt.s32.f32 %v410
    %v427 = vcvt.s32.f32 %v411
    %v428 = vcvt.s32.f32 %v412
    %v429 = vcvt.s32.f32 %v413
    %v430 = vcvt.s32.f32 %v414
    %v431 = vcvt.s32.f32 %v415
    %v432 = vcvt.s32.f32 %v416
    %v433 = vcvt.s32.f32 %v417
    %v434 = vcvt.s32.f32 %v418
    %v435 = vcvt.s32.f32 %v419
    %v436 = vcvt.s32.f32 %v420
    %v437 = vcvt.s32.f32 %v421
    %v438 = vcvt.s32.f32 %v422
    %v439 = vcvt.s32.f32 %v423
    %v440 = vcvt.s32.f32 %v424
    %v441 = vcvt.s32.f32 %v425
    %v442 = vld [vmem:[%s2] sm:$0xff]
    %v443 = vld [vmem:[%s2 + $0x8] sm:$0xff]
    %v445 = vsel %vm152, %v426, 0
    %v448 = vsel %vm152, %v427, 0
    %v451 = vsel %vm152, %v428, 0
    %v454 = vsel %vm152, %v429, 0
    %v457 = vsel %vm152, %v430, 0
    %v460 = vsel %vm152, %v431, 0
    %v463 = vsel %vm152, %v432, 0
    %v466 = vsel %vm152, %v433, 0
    %v469 = vsel %vm152, %v434, 0
    %v472 = vsel %vm152, %v435, 0
    %v475 = vsel %vm152, %v436, 0
    %v478 = vsel %vm152, %v437, 0
    %v481 = vsel %vm152, %v438, 0
    %v484 = vsel %vm152, %v439, 0
    %v487 = vsel %vm152, %v440, 0
    %v490 = vsel %vm152, %v441, 0
    %492 = vmatprep.subr.mxu0 0.0
    %493 = vmatpush1.msra.mxu0 0.0
    %494 = vmatprep.subr.mxu0 0.0
    %495 = vmatpush1.msra.mxu0 0.0
    %496 = vmatprep.subr.mxu0 0.0
    %497 = vmatpush1.msra.mxu0 0.0
    %498 = vmatprep.subr.mxu0 0.0
    %499 = vmatpush1.msra.mxu0 0.0
    %500 = vmatprep.subr.mxu0 0.0
    %501 = vmatpush1.msra.mxu0 0.0
    %502 = vmatprep.subr.mxu0 0.0
    %503 = vmatpush1.msra.mxu0 0.0
    %504 = vmatprep.subr.mxu0 0.0
    %505 = vmatpush1.msra.mxu0 0.0
    %506 = vmatprep.subr.mxu0 0.0
    %507 = vmatpush1.msra.mxu0 0.0
    %508 = vmatprep.subr.mxu0 0.0
    %509 = vmatpush1.msra.mxu0 0.0
    %510 = vmatprep.subr.mxu0 0.0
    %511 = vmatpush1.msra.mxu0 0.0
    %512 = vmatprep.subr.mxu0 0.0
    %513 = vmatpush1.msra.mxu0 0.0
    %514 = vmatprep.subr.mxu0 0.0
    %515 = vmatpush1.msra.mxu0 0.0
    %516 = vmatprep.subr.mxu0 0.0
    %517 = vmatpush1.msra.mxu0 0.0
    %518 = vmatprep.subr.mxu0 0.0
    %519 = vmatpush1.msra.mxu0 0.0
    %520 = vmatprep.subr.mxu0 0.0
    %521 = vmatpush1.msra.mxu0 %v443
    %522 = vmatprep.subr.mxu0 0.0
    %523 = vmatpush1.msra.mxu0 %v442
    %524 = vmatprep.subr.mxu0 0.0
    %525 = vmatpush2.msra.mxu0 0.0
    %526 = vmatprep.subr.mxu0 0.0
    %527 = vmatpush2.msra.mxu0 0.0
    %528 = vmatprep.subr.mxu0 0.0
    %529 = vmatpush2.msra.mxu0 0.0
    %530 = vmatprep.subr.mxu0 0.0
    %531 = vmatpush2.msra.mxu0 0.0
    %532 = vmatprep.subr.mxu0 0.0
    %533 = vmatpush2.msra.mxu0 0.0
    %534 = vmatprep.subr.mxu0 0.0
    %535 = vmatpush2.msra.mxu0 0.0
    %536 = vmatprep.subr.mxu0 0.0
    %537 = vmatpush2.msra.mxu0 0.0
    %538 = vmatprep.subr.mxu0 0.0
    %539 = vmatpush2.msra.mxu0 0.0
    %540 = vmatprep.subr.mxu0 0.0
    %541 = vmatpush2.msra.mxu0 0.0
    %542 = vmatprep.subr.mxu0 0.0
    %543 = vmatpush2.msra.mxu0 0.0
    %544 = vmatprep.subr.mxu0 0.0
    %545 = vmatpush2.msra.mxu0 0.0
    %546 = vmatprep.subr.mxu0 0.0
    %547 = vmatpush2.msra.mxu0 0.0
    %548 = vmatprep.subr.mxu0 0.0
    %549 = vmatpush2.msra.mxu0 0.0
    %550 = vmatprep.subr.mxu0 0.0
    %551 = vmatpush2.msra.mxu0 0.0
    %552 = vmatprep.subr.mxu0 0.0
    %553 = vmatpush2.msra.mxu0 0.0
    %554 = vmatprep.subr.mxu0 0.0
    %555 = vmatpush2.msra.mxu0 0.0
    %556 = vmatprep.mubr.f32.mxu0 0.0
    %557 = vmatmul.mubr.f32.gmra.mxu0 %v445
    %v558 = vpop.f32.mrf.mxu0
    %v559 = vadd.f32 0.0, %v558
    %v560 = vpop.f32.mrf.mxu0
    %561 = vmatprep.mubr.f32.mxu0 0.0
    %562 = vmatmul.mubr.f32.gmra.mxu0 %v448
    %v563 = vpop.f32.mrf.mxu0
    %v564 = vadd.f32 0.0, %v563
    %v565 = vpop.f32.mrf.mxu0
    %566 = vmatprep.mubr.f32.mxu0 0.0
    %567 = vmatmul.mubr.f32.gmra.mxu0 %v451
    %v568 = vpop.f32.mrf.mxu0
    %v569 = vadd.f32 0.0, %v568
    %v570 = vpop.f32.mrf.mxu0
    %571 = vmatprep.mubr.f32.mxu0 0.0
    %572 = vmatmul.mubr.f32.gmra.mxu0 %v454
    %v573 = vpop.f32.mrf.mxu0
    %v574 = vadd.f32 0.0, %v573
    %v575 = vpop.f32.mrf.mxu0
    %576 = vmatprep.mubr.f32.mxu0 0.0
    %577 = vmatmul.mubr.f32.gmra.mxu0 %v457
    %v578 = vpop.f32.mrf.mxu0
    %v579 = vadd.f32 0.0, %v578
    %v580 = vpop.f32.mrf.mxu0
    %581 = vmatprep.mubr.f32.mxu0 0.0
    %582 = vmatmul.mubr.f32.gmra.mxu0 %v460
    %v583 = vpop.f32.mrf.mxu0
    %v584 = vadd.f32 0.0, %v583
    %v585 = vpop.f32.mrf.mxu0
    %586 = vmatprep.mubr.f32.mxu0 0.0
    %587 = vmatmul.mubr.f32.gmra.mxu0 %v463
    %v588 = vpop.f32.mrf.mxu0
    %v589 = vadd.f32 0.0, %v588
    %v590 = vpop.f32.mrf.mxu0
    %591 = vmatprep.mubr.f32.mxu0 0.0
    %592 = vmatmul.mubr.f32.gmra.mxu0 %v466
    %v593 = vpop.f32.mrf.mxu0
    %v594 = vadd.f32 0.0, %v593
    %v595 = vpop.f32.mrf.mxu0
    %596 = vmatprep.mubr.f32.mxu0 0.0
    %597 = vmatmul.mubr.f32.gmra.mxu0 %v469
    %v598 = vpop.f32.mrf.mxu0
    %v599 = vadd.f32 0.0, %v598
    %v600 = vpop.f32.mrf.mxu0
    %601 = vmatprep.mubr.f32.mxu0 0.0
    %602 = vmatmul.mubr.f32.gmra.mxu0 %v472
    %v603 = vpop.f32.mrf.mxu0
    %v604 = vadd.f32 0.0, %v603
    %v605 = vpop.f32.mrf.mxu0
    %606 = vmatprep.mubr.f32.mxu0 0.0
    %607 = vmatmul.mubr.f32.gmra.mxu0 %v475
    %v608 = vpop.f32.mrf.mxu0
    %v609 = vadd.f32 0.0, %v608
    %v610 = vpop.f32.mrf.mxu0
    %611 = vmatprep.mubr.f32.mxu0 0.0
    %612 = vmatmul.mubr.f32.gmra.mxu0 %v478
    %v613 = vpop.f32.mrf.mxu0
    %v614 = vadd.f32 0.0, %v613
    %v615 = vpop.f32.mrf.mxu0
    %616 = vmatprep.mubr.f32.mxu0 0.0
    %617 = vmatmul.mubr.f32.gmra.mxu0 %v481
    %v618 = vpop.f32.mrf.mxu0
    %v619 = vadd.f32 0.0, %v618
    %v620 = vpop.f32.mrf.mxu0
    %621 = vmatprep.mubr.f32.mxu0 0.0
    %622 = vmatmul.mubr.f32.gmra.mxu0 %v484
    %v623 = vpop.f32.mrf.mxu0
    %v624 = vadd.f32 0.0, %v623
    %v625 = vpop.f32.mrf.mxu0
    %626 = vmatprep.mubr.f32.mxu0 0.0
    %627 = vmatmul.mubr.f32.gmra.mxu0 %v487
    %v628 = vpop.f32.mrf.mxu0
    %v629 = vadd.f32 0.0, %v628
    %v630 = vpop.f32.mrf.mxu0
    %631 = vmatprep.mubr.f32.mxu0 0.0
    %632 = vmatmul.mubr.f32.gmra.mxu0 %v490
    %v633 = vpop.f32.mrf.mxu0
    %v634 = vadd.f32 0.0, %v633
    %v635 = vpop.f32.mrf.mxu0
    %636 = vdwg.mxu0
    %637 = vset.pattern.permute.xlu0 1
    %638 = vperm.xlu0 %637, %v36
    %v639 = vpop.permute.xlu0 %638
    %640 = vset.pattern.permute.xlu0 1
    %641 = vperm.xlu0 %640, %v37
    %v642 = vpop.permute.xlu0 %641
    %643 = vset.pattern.permute.xlu0 1
    %644 = vperm.xlu0 %643, %v38
    %v645 = vpop.permute.xlu0 %644
    %646 = vset.pattern.permute.xlu0 1
    %647 = vperm.xlu0 %646, %v39
    %v648 = vpop.permute.xlu0 %647
    %649 = vset.pattern.permute.xlu0 1
    %650 = vperm.xlu0 %649, %v40
    %v651 = vpop.permute.xlu0 %650
    %652 = vset.pattern.permute.xlu0 1
    %653 = vperm.xlu0 %652, %v41
    %v654 = vpop.permute.xlu0 %653
    %655 = vset.pattern.permute.xlu0 1
    %656 = vperm.xlu0 %655, %v42
    %v657 = vpop.permute.xlu0 %656
    %658 = vset.pattern.permute.xlu0 1
    %659 = vperm.xlu0 %658, %v43
    %v660 = vpop.permute.xlu0 %659
    %661 = vset.pattern.permute.xlu0 1
    %662 = vperm.xlu0 %661, %v44
    %v663 = vpop.permute.xlu0 %662
    %664 = vset.pattern.permute.xlu0 1
    %665 = vperm.xlu0 %664, %v45
    %v666 = vpop.permute.xlu0 %665
    %667 = vset.pattern.permute.xlu0 1
    %668 = vperm.xlu0 %667, %v46
    %v669 = vpop.permute.xlu0 %668
    %670 = vset.pattern.permute.xlu0 1
    %671 = vperm.xlu0 %670, %v47
    %v672 = vpop.permute.xlu0 %671
    %673 = vset.pattern.permute.xlu0 1
    %674 = vperm.xlu0 %673, %v48
    %v675 = vpop.permute.xlu0 %674
    %676 = vset.pattern.permute.xlu0 1
    %677 = vperm.xlu0 %676, %v49
    %v678 = vpop.permute.xlu0 %677
    %679 = vset.pattern.permute.xlu0 1
    %680 = vperm.xlu0 %679, %v50
    %v681 = vpop.permute.xlu0 %680
    %682 = vset.pattern.permute.xlu0 1
    %683 = vperm.xlu0 %682, %v51
    %v684 = vpop.permute.xlu0 %683
    %vm685 = vcmp.eq.s32.totalorder %v53, %v639
    %vm686 = vcmp.eq.s32.totalorder %v53, %v642
    %vm687 = vcmp.eq.s32.totalorder %v53, %v645
    %vm688 = vcmp.eq.s32.totalorder %v53, %v648
    %vm689 = vcmp.eq.s32.totalorder %v53, %v651
    %vm690 = vcmp.eq.s32.totalorder %v53, %v654
    %vm691 = vcmp.eq.s32.totalorder %v53, %v657
    %vm692 = vcmp.eq.s32.totalorder %v53, %v660
    %vm693 = vcmp.eq.s32.totalorder %v53, %v663
    %vm694 = vcmp.eq.s32.totalorder %v53, %v666
    %vm695 = vcmp.eq.s32.totalorder %v53, %v669
    %vm696 = vcmp.eq.s32.totalorder %v53, %v672
    %vm697 = vcmp.eq.s32.totalorder %v53, %v675
    %vm698 = vcmp.eq.s32.totalorder %v53, %v678
    %vm699 = vcmp.eq.s32.totalorder %v53, %v681
    %vm700 = vcmp.eq.s32.totalorder %v53, %v684
    %v701 = vsel %vm685, %v268, 0.0
    %v702 = vsel %vm686, %v273, 0.0
    %v703 = vsel %vm687, %v278, 0.0
    %v704 = vsel %vm688, %v283, 0.0
    %v705 = vsel %vm689, %v288, 0.0
    %v706 = vsel %vm690, %v293, 0.0
    %v707 = vsel %vm691, %v298, 0.0
    %v708 = vsel %vm692, %v303, 0.0
    %v709 = vsel %vm693, %v308, 0.0
    %v710 = vsel %vm694, %v313, 0.0
    %v711 = vsel %vm695, %v318, 0.0
    %v712 = vsel %vm696, %v323, 0.0
    %v713 = vsel %vm697, %v328, 0.0
    %v714 = vsel %vm698, %v333, 0.0
    %v715 = vsel %vm699, %v338, 0.0
    %v716 = vsel %vm700, %v343, 0.0
    %717 = vset.pattern.permute.xlu0 3
    %718 = vperm.xlu0 %717, %v36
    %v719 = vpop.permute.xlu0 %718
    %720 = vset.pattern.permute.xlu0 3
    %721 = vperm.xlu0 %720, %v37
    %v722 = vpop.permute.xlu0 %721
    %723 = vset.pattern.permute.xlu0 3
    %724 = vperm.xlu0 %723, %v38
    %v725 = vpop.permute.xlu0 %724
    %726 = vset.pattern.permute.xlu0 3
    %727 = vperm.xlu0 %726, %v39
    %v728 = vpop.permute.xlu0 %727
    %729 = vset.pattern.permute.xlu0 3
    %730 = vperm.xlu0 %729, %v40
    %v731 = vpop.permute.xlu0 %730
    %732 = vset.pattern.permute.xlu0 3
    %733 = vperm.xlu0 %732, %v41
    %v734 = vpop.permute.xlu0 %733
    %735 = vset.pattern.permute.xlu0 3
    %736 = vperm.xlu0 %735, %v42
    %v737 = vpop.permute.xlu0 %736
    %738 = vset.pattern.permute.xlu0 3
    %739 = vperm.xlu0 %738, %v43
    %v740 = vpop.permute.xlu0 %739
    %741 = vset.pattern.permute.xlu0 3
    %742 = vperm.xlu0 %741, %v44
    %v743 = vpop.permute.xlu0 %742
    %744 = vset.pattern.permute.xlu0 3
    %745 = vperm.xlu0 %744, %v45
    %v746 = vpop.permute.xlu0 %745
    %747 = vset.pattern.permute.xlu0 3
    %748 = vperm.xlu0 %747, %v46
    %v749 = vpop.permute.xlu0 %748
    %750 = vset.pattern.permute.xlu0 3
    %751 = vperm.xlu0 %750, %v47
    %v752 = vpop.permute.xlu0 %751
    %753 = vset.pattern.permute.xlu0 3
    %754 = vperm.xlu0 %753, %v48
    %v755 = vpop.permute.xlu0 %754
    %756 = vset.pattern.permute.xlu0 3
    %757 = vperm.xlu0 %756, %v49
    %v758 = vpop.permute.xlu0 %757
    %759 = vset.pattern.permute.xlu0 3
    %760 = vperm.xlu0 %759, %v50
    %v761 = vpop.permute.xlu0 %760
    %762 = vset.pattern.permute.xlu0 3
    %763 = vperm.xlu0 %762, %v51
    %v764 = vpop.permute.xlu0 %763
    %vm765 = vcmp.eq.s32.totalorder %v53, %v719
    %vm766 = vcmp.eq.s32.totalorder %v53, %v722
    %vm767 = vcmp.eq.s32.totalorder %v53, %v725
    %vm768 = vcmp.eq.s32.totalorder %v53, %v728
    %vm769 = vcmp.eq.s32.totalorder %v53, %v731
    %vm770 = vcmp.eq.s32.totalorder %v53, %v734
    %vm771 = vcmp.eq.s32.totalorder %v53, %v737
    %vm772 = vcmp.eq.s32.totalorder %v53, %v740
    %vm773 = vcmp.eq.s32.totalorder %v53, %v743
    %vm774 = vcmp.eq.s32.totalorder %v53, %v746
    %vm775 = vcmp.eq.s32.totalorder %v53, %v749
    %vm776 = vcmp.eq.s32.totalorder %v53, %v752
    %vm777 = vcmp.eq.s32.totalorder %v53, %v755
    %vm778 = vcmp.eq.s32.totalorder %v53, %v758
    %vm779 = vcmp.eq.s32.totalorder %v53, %v761
    %vm780 = vcmp.eq.s32.totalorder %v53, %v764
    %v781 = vsel %vm765, %v559, 0.0
    %v782 = vsel %vm766, %v564, 0.0
    %v783 = vsel %vm767, %v569, 0.0
    %v784 = vsel %vm768, %v574, 0.0
    %v785 = vsel %vm769, %v579, 0.0
    %v786 = vsel %vm770, %v584, 0.0
    %v787 = vsel %vm771, %v589, 0.0
    %v788 = vsel %vm772, %v594, 0.0
    %v789 = vsel %vm773, %v599, 0.0
    %v790 = vsel %vm774, %v604, 0.0
    %v791 = vsel %vm775, %v609, 0.0
    %v792 = vsel %vm776, %v614, 0.0
    %v793 = vsel %vm777, %v619, 0.0
    %v794 = vsel %vm778, %v624, 0.0
    %v795 = vsel %vm779, %v629, 0.0
    %v796 = vsel %vm780, %v634, 0.0
    %v797 = vsub.f32 %v701, %v781
    %v798 = vsub.f32 %v702, %v782
    %v799 = vsub.f32 %v703, %v783
    %v800 = vsub.f32 %v704, %v784
    %v801 = vsub.f32 %v705, %v785
    %v802 = vsub.f32 %v706, %v786
    %v803 = vsub.f32 %v707, %v787
    %v804 = vsub.f32 %v708, %v788
    %v805 = vsub.f32 %v709, %v789
    %v806 = vsub.f32 %v710, %v790
    %v807 = vsub.f32 %v711, %v791
    %v808 = vsub.f32 %v712, %v792
    %v809 = vsub.f32 %v713, %v793
    %v810 = vsub.f32 %v714, %v794
    %v811 = vsub.f32 %v715, %v795
    %v812 = vsub.f32 %v716, %v796
    %v813 = vsel %vm152, %v797, 0.0
    %814 = vadd.xlane.f32.xlu0 %v813
    %v815 = vpop.xlane.xlu0 %814
    %v816 = vsel %vm152, %v798, 0.0
    %817 = vadd.xlane.f32.xlu0 %v816
    %v818 = vpop.xlane.xlu0 %817
    %v819 = vsel %vm152, %v799, 0.0
    %820 = vadd.xlane.f32.xlu0 %v819
    %v821 = vpop.xlane.xlu0 %820
    %v822 = vsel %vm152, %v800, 0.0
    %823 = vadd.xlane.f32.xlu0 %v822
    %v824 = vpop.xlane.xlu0 %823
    %v825 = vsel %vm152, %v801, 0.0
    %826 = vadd.xlane.f32.xlu0 %v825
    %v827 = vpop.xlane.xlu0 %826
    %v828 = vsel %vm152, %v802, 0.0
    %829 = vadd.xlane.f32.xlu0 %v828
    %v830 = vpop.xlane.xlu0 %829
    %v831 = vsel %vm152, %v803, 0.0
    %832 = vadd.xlane.f32.xlu0 %v831
    %v833 = vpop.xlane.xlu0 %832
    %v834 = vsel %vm152, %v804, 0.0
    %835 = vadd.xlane.f32.xlu0 %v834
    %v836 = vpop.xlane.xlu0 %835
    %v837 = vsel %vm152, %v805, 0.0
    %838 = vadd.xlane.f32.xlu0 %v837
    %v839 = vpop.xlane.xlu0 %838
    %v840 = vsel %vm152, %v806, 0.0
    %841 = vadd.xlane.f32.xlu0 %v840
    %v842 = vpop.xlane.xlu0 %841
    %v843 = vsel %vm152, %v807, 0.0
    %844 = vadd.xlane.f32.xlu0 %v843
    %v845 = vpop.xlane.xlu0 %844
    %v846 = vsel %vm152, %v808, 0.0
    %847 = vadd.xlane.f32.xlu0 %v846
    %v848 = vpop.xlane.xlu0 %847
    %v849 = vsel %vm152, %v809, 0.0
    %850 = vadd.xlane.f32.xlu0 %v849
    %v851 = vpop.xlane.xlu0 %850
    %v852 = vsel %vm152, %v810, 0.0
    %853 = vadd.xlane.f32.xlu0 %v852
    %v854 = vpop.xlane.xlu0 %853
    %v855 = vsel %vm152, %v811, 0.0
    %856 = vadd.xlane.f32.xlu0 %v855
    %v857 = vpop.xlane.xlu0 %856
    %v858 = vsel %vm152, %v812, 0.0
    %859 = vadd.xlane.f32.xlu0 %v858
    %v860 = vpop.xlane.xlu0 %859
    %s861 = smul.u32 0, 128
    %v862 = vlaneseq
    %v863 = vshrl.u32 %v862, 7
    %v864 = vadd.s32 %v863, 8
    %v865 = vadd.s32 %v863, 16
    %v866 = vadd.s32 %v863, 24
    %v867 = vadd.s32 %v863, 32
    %v868 = vadd.s32 %v863, 40
    %v869 = vadd.s32 %v863, 48
    %v870 = vadd.s32 %v863, 56
    %v871 = vadd.s32 %v863, 64
    %v872 = vadd.s32 %v863, 72
    %v873 = vadd.s32 %v863, 80
    %v874 = vadd.s32 %v863, 88
    %v875 = vadd.s32 %v863, 96
    %v876 = vadd.s32 %v863, 104
    %v877 = vadd.s32 %v863, 112
    %v878 = vadd.s32 %v863, 120
    %v879 = vstv %s861
    %v880 = vadd.s32 %v879, %v863
    %v881 = vadd.s32 %v879, %v864
    %v882 = vadd.s32 %v879, %v865
    %v883 = vadd.s32 %v879, %v866
    %v884 = vadd.s32 %v879, %v867
    %v885 = vadd.s32 %v879, %v868
    %v886 = vadd.s32 %v879, %v869
    %v887 = vadd.s32 %v879, %v870
    %v888 = vadd.s32 %v879, %v871
    %v889 = vadd.s32 %v879, %v872
    %v890 = vadd.s32 %v879, %v873
    %v891 = vadd.s32 %v879, %v874
    %v892 = vadd.s32 %v879, %v875
    %v893 = vadd.s32 %v879, %v876
    %v894 = vadd.s32 %v879, %v877
    %v895 = vadd.s32 %v879, %v878
    %v896 = vld [vmem:[#allocation2] sm:$0xff]
    %v897 = vld [vmem:[#allocation2 + $0x8] sm:$0xff]
    %v898 = vld [vmem:[#allocation2 + $0x10] sm:$0xff]
    %v899 = vld [vmem:[#allocation2 + $0x18] sm:$0xff]
    %v900 = vld [vmem:[#allocation2 + $0x20] sm:$0xff]
    %v901 = vld [vmem:[#allocation2 + $0x28] sm:$0xff]
    %v902 = vld [vmem:[#allocation2 + $0x30] sm:$0xff]
    %v903 = vld [vmem:[#allocation2 + $0x38] sm:$0xff]
    %v904 = vld [vmem:[#allocation2 + $0x40] sm:$0xff]
    %v905 = vld [vmem:[#allocation2 + $0x48] sm:$0xff]
    %v906 = vld [vmem:[#allocation2 + $0x50] sm:$0xff]
    %v907 = vld [vmem:[#allocation2 + $0x58] sm:$0xff]
    %v908 = vld [vmem:[#allocation2 + $0x60] sm:$0xff]
    %v909 = vld [vmem:[#allocation2 + $0x68] sm:$0xff]
    %v910 = vld [vmem:[#allocation2 + $0x70] sm:$0xff]
    %v911 = vld [vmem:[#allocation2 + $0x78] sm:$0xff]
    %vm912 = vcmp.lt.s32.totalorder %v880, 15
    %vm913 = vcmp.lt.s32.totalorder %v881, 15
    %vm914 = vcmp.lt.s32.totalorder %v882, 15
    %vm915 = vcmp.lt.s32.totalorder %v883, 15
    %vm916 = vcmp.lt.s32.totalorder %v884, 15
    %vm917 = vcmp.lt.s32.totalorder %v885, 15
    %vm918 = vcmp.lt.s32.totalorder %v886, 15
    %vm919 = vcmp.lt.s32.totalorder %v887, 15
    %vm920 = vcmp.lt.s32.totalorder %v888, 15
    %vm921 = vcmp.lt.s32.totalorder %v889, 15
    %vm922 = vcmp.lt.s32.totalorder %v890, 15
    %vm923 = vcmp.lt.s32.totalorder %v891, 15
    %vm924 = vcmp.lt.s32.totalorder %v892, 15
    %vm925 = vcmp.lt.s32.totalorder %v893, 15
    %vm926 = vcmp.lt.s32.totalorder %v894, 15
    %vm927 = vcmp.lt.s32.totalorder %v895, 15
    %v928 = vmul.f32 %v815, %v815
    %v929 = vmul.f32 %v818, %v818
    %v930 = vmul.f32 %v821, %v821
    %v931 = vmul.f32 %v824, %v824
    %v932 = vmul.f32 %v827, %v827
    %v933 = vmul.f32 %v830, %v830
    %v934 = vmul.f32 %v833, %v833
    %v935 = vmul.f32 %v836, %v836
    %v936 = vmul.f32 %v839, %v839
    %v937 = vmul.f32 %v842, %v842
    %v938 = vmul.f32 %v845, %v845
    %v939 = vmul.f32 %v848, %v848
    %v940 = vmul.f32 %v851, %v851
    %v941 = vmul.f32 %v854, %v854
    %v942 = vmul.f32 %v857, %v857
    %v943 = vmul.f32 %v860, %v860
    %v944 = vsel %vm912, %v928, 0.0
    %v945 = vsel %vm913, %v929, 0.0
    %v946 = vsel %vm914, %v930, 0.0
    %v947 = vsel %vm915, %v931, 0.0
    %v948 = vsel %vm916, %v932, 0.0
    %v949 = vsel %vm917, %v933, 0.0
    %v950 = vsel %vm918, %v934, 0.0
    %v951 = vsel %vm919, %v935, 0.0
    %v952 = vsel %vm920, %v936, 0.0
    %v953 = vsel %vm921, %v937, 0.0
    %v954 = vsel %vm922, %v938, 0.0
    %v955 = vsel %vm923, %v939, 0.0
    %v956 = vsel %vm924, %v940, 0.0
    %v957 = vsel %vm925, %v941, 0.0
    %v958 = vsel %vm926, %v942, 0.0
    %v959 = vsel %vm927, %v943, 0.0
    %v960 = vadd.f32 %v896, %v944
    %v961 = vadd.f32 %v897, %v945
    %v962 = vadd.f32 %v898, %v946
    %v963 = vadd.f32 %v899, %v947
    %v964 = vadd.f32 %v900, %v948
    %v965 = vadd.f32 %v901, %v949
    %v966 = vadd.f32 %v902, %v950
    %v967 = vadd.f32 %v903, %v951
    %v968 = vadd.f32 %v904, %v952
    %v969 = vadd.f32 %v905, %v953
    %v970 = vadd.f32 %v906, %v954
    %v971 = vadd.f32 %v907, %v955
    %v972 = vadd.f32 %v908, %v956
    %v973 = vadd.f32 %v909, %v957
    %v974 = vadd.f32 %v910, %v958
    %v975 = vadd.f32 %v911, %v959
    %vm976 = vcmask 7168
    %977 = vst.msk [vmem:[#allocation2] sm:$0xff] %vm976, %v960
    %978 = vst.msk [vmem:[#allocation2 + $0x8] sm:$0xff] %vm976, %v961
    %979 = vst.msk [vmem:[#allocation2 + $0x10] sm:$0xff] %vm976, %v962
    %980 = vst.msk [vmem:[#allocation2 + $0x18] sm:$0xff] %vm976, %v963
    %981 = vst.msk [vmem:[#allocation2 + $0x20] sm:$0xff] %vm976, %v964
    %982 = vst.msk [vmem:[#allocation2 + $0x28] sm:$0xff] %vm976, %v965
    %983 = vst.msk [vmem:[#allocation2 + $0x30] sm:$0xff] %vm976, %v966
    %984 = vst.msk [vmem:[#allocation2 + $0x38] sm:$0xff] %vm976, %v967
    %985 = vst.msk [vmem:[#allocation2 + $0x40] sm:$0xff] %vm976, %v968
    %986 = vst.msk [vmem:[#allocation2 + $0x48] sm:$0xff] %vm976, %v969
    %987 = vst.msk [vmem:[#allocation2 + $0x50] sm:$0xff] %vm976, %v970
    %988 = vst.msk [vmem:[#allocation2 + $0x58] sm:$0xff] %vm976, %v971
    %989 = vst.msk [vmem:[#allocation2 + $0x60] sm:$0xff] %vm976, %v972
    %990 = vst.msk [vmem:[#allocation2 + $0x68] sm:$0xff] %vm976, %v973
    %991 = vst.msk [vmem:[#allocation2 + $0x70] sm:$0xff] %vm976, %v974
    %992 = vst.msk [vmem:[#allocation2 + $0x78] sm:$0xff] %vm976, %v975
    // Predicated region
    $region18: #{_signature_sq_error_resident.1} parent=1 // pred_check
      %p993 = pneg %p15
    $region19: #{_signature_sq_error_resident.1} parent=1 // pred_check_branch
      %995 = sbr.rel (%p993) target = $region21
    $region20: #{_signature_sq_error_resident.1} parent=1 // pred_region
      %v996 = vld [vmem:[#allocation2] sm:$0xff]
      %v997 = vld [vmem:[#allocation2 + $0x8] sm:$0xff]
      %v998 = vld [vmem:[#allocation2 + $0x10] sm:$0xff]
      %v999 = vld [vmem:[#allocation2 + $0x18] sm:$0xff]
      %v1000 = vld [vmem:[#allocation2 + $0x20] sm:$0xff]
      %v1001 = vld [vmem:[#allocation2 + $0x28] sm:$0xff]
      %v1002 = vld [vmem:[#allocation2 + $0x30] sm:$0xff]
      %v1003 = vld [vmem:[#allocation2 + $0x38] sm:$0xff]
      %v1004 = vld [vmem:[#allocation2 + $0x40] sm:$0xff]
      %v1005 = vld [vmem:[#allocation2 + $0x48] sm:$0xff]
      %v1006 = vld [vmem:[#allocation2 + $0x50] sm:$0xff]
      %v1007 = vld [vmem:[#allocation2 + $0x58] sm:$0xff]
      %v1008 = vld [vmem:[#allocation2 + $0x60] sm:$0xff]
      %v1009 = vld [vmem:[#allocation2 + $0x68] sm:$0xff]
      %v1010 = vld [vmem:[#allocation2 + $0x70] sm:$0xff]
      %v1011 = vld [vmem:[#allocation2 + $0x78] sm:$0xff]
      %v1012 = vsel %vm976, %v996, 0.0
      %v1013 = vsel %vm976, %v997, 0.0
      %v1014 = vadd.f32 %v1012, %v1013
      %v1015 = vsel %vm976, %v998, 0.0
      %v1016 = vadd.f32 %v1014, %v1015
      %v1017 = vsel %vm976, %v999, 0.0
      %v1018 = vadd.f32 %v1016, %v1017
      %v1019 = vsel %vm976, %v1000, 0.0
      %v1020 = vadd.f32 %v1018, %v1019
      %v1021 = vsel %vm976, %v1001, 0.0
      %v1022 = vadd.f32 %v1020, %v1021
      %v1023 = vsel %vm976, %v1002, 0.0
      %v1024 = vadd.f32 %v1022, %v1023
      %v1025 = vsel %vm976, %v1003, 0.0
      %v1026 = vadd.f32 %v1024, %v1025
      %v1027 = vsel %vm976, %v1004, 0.0
      %v1028 = vadd.f32 %v1026, %v1027
      %v1029 = vsel %vm976, %v1005, 0.0
      %v1030 = vadd.f32 %v1028, %v1029
      %v1031 = vsel %vm976, %v1006, 0.0
      %v1032 = vadd.f32 %v1030, %v1031
      %v1033 = vsel %vm976, %v1007, 0.0
      %v1034 = vadd.f32 %v1032, %v1033
      %v1035 = vsel %vm976, %v1008, 0.0
      %v1036 = vadd.f32 %v1034, %v1035
      %v1037 = vsel %vm976, %v1009, 0.0
      %v1038 = vadd.f32 %v1036, %v1037
      %v1039 = vsel %vm976, %v1010, 0.0
      %v1040 = vadd.f32 %v1038, %v1039
      %v1041 = vsel %vm976, %v1011, 0.0
      %v1042 = vadd.f32 %v1040, %v1041
      %v1043 = vrot.slane %v1042, 4
      %v1044 = vadd.f32 %v1042, %v1043
      %v1045 = vrot.slane %v1044, 2
      %v1046 = vadd.f32 %v1044, %v1045
      %v1047 = vrot.slane %v1046, 1
      %v1048 = vadd.f32 %v1046, %v1047
      %vm1049 = vcmask 0
      %1050 = vst.msk [vmem:[#allocation3] sm:$0x1] %vm1049, %v1048
    $region21: #{_signature_sq_error_resident.1} parent=1 // pred_fallthru
      _
    // Predicated region
    $region22: #{_signature_sq_error_resident.1} parent=1 // pred_check
      _
    $region23: #{_signature_sq_error_resident.1} parent=1 // pred_check_branch
      %1052 = sbr.rel (0) target = $region25
    $region24: #{_signature_sq_error_resident.1} parent=1 // pred_region
      %s1054 = ssub.s32 16, 16
      %1055 = vsyncadd [#allocation4], %s1054
      %s1057 = sshll.u32 [#allocation3], 4
      %s1058 = int_to_ptr.vmem [resolvable:$true] %s1057
      %1060 = dma.vmem_to_hbm [thread:$0]  %s1058, 16, %s3, [#allocation4]
    $region25: #{_signature_sq_error_resident.1} parent=1 // pred_fallthru
      _
    // Predicated region
    $region26: #{_signature_sq_error_resident.1} parent=1 // pred_check
      _
    $region27: #{_signature_sq_error_resident.1} parent=1 // pred_check_branch
      %1062 = sbr.rel (0) target = $region29
    $region28: #{_signature_sq_error_resident.1} parent=1 // pred_region
      %1063 = dma.done [#allocation4], 16
    $region29: #{_signature_sq_error_resident.1} parent=1 // pred_fallthru
      _
    %1064 = vsyncpa [#allocation4], 1

</llo_original>
